<compile_context>
chip_gen: v7x
topology: tpu7x:2x2x1
jax: 0.10.0
libtpu: 0.0.40
codegen_flags: <defaults>
</compile_context>

<pallas_src>
import math

import jax
import jax.numpy as jnp
from jax.experimental import pallas as pl
from jax.experimental.pallas import tpu as pltpu


# ---------------------------------------------------------------------------
# Pallas kernel: sub-pixel ConvTranspose3d tile + fused bias + BN partials
# ---------------------------------------------------------------------------
def _deconv_mm_kernel(p_ref, w_ref, b_ref, y_ref, ssum_ref, ssq_ref):
    """One lane-dense MXU matmul per (batch, row-tile) + fused epilogue.

    p_ref    : (1, TM, KP)    bf16 im2col rows, `pack` spatial rows per vector row
    w_ref    : (KP, CP)       bf16 block-diagonal phase-packed weight
    b_ref    : (1, CP)        f32 phase-packed bias
    y_ref    : (1, TM, CP)    f32 conv + bias output (row-pack / phase-major cols)
    ssum_ref : (1, 1, 1, CP)  f32 per-tile column sums          (BatchNorm partials)
    ssq_ref  : (1, 1, 1, CP)  f32 per-tile column sums of squares
    """
    y = jnp.dot(p_ref[0], w_ref[...], preferred_element_type=jnp.float32)
    y = y + b_ref[...]                                   # (TM, CP) + (1, CP)
    y_ref[...] = y.reshape(y_ref.shape)
    ssum_ref[...] = jnp.sum(y, axis=0, keepdims=True).reshape(ssum_ref.shape)
    # TODO(synk): E[y^2]-E[y]^2 in f32 is cancellation-prone when |mean| >> std;
    # use a shifted / Welford-style merge of per-tile partials for real activations.
    ssq_ref[...] = jnp.sum(y * y, axis=0, keepdims=True).reshape(ssq_ref.shape)


# ---------------------------------------------------------------------------
# Plain-JAX layout plumbing (done once per call, fused by XLA)
# ---------------------------------------------------------------------------
def _im2col_2x2x2(x_ndhwc):
    """(N, D, H, W, C) -> (N, D*H*W, 8*C) "high side" 2x2x2 halo neighborhoods."""
    n, d, h, w, c = x_ndhwc.shape
    xp = jnp.pad(x_ndhwc, ((0, 0), (0, 1), (0, 1), (0, 1), (0, 0)))
    slabs = [xp[:, dd:dd + d, dh:dh + h, dw:dw + w, :]
             for dd in (0, 1) for dh in (0, 1) for dw in (0, 1)]
    patch = jnp.stack(slabs, axis=4)                 # (N, D, H, W, 8, C)
    return patch.reshape(n, d * h * w, 8 * c)
    # TODO(synk): for Cin >~ 32 / large spatial, do this halo gather inside the
    # kernel from an NDHWC input (memory_space=pl.ANY + manual DMA) instead of
    # materializing the 8x-inflated patch tensor in HBM.


def _build_phase_weight(w_t):
    """ConvTranspose3d weight (Cin, Cout, 3, 3, 3) -> (8*Cin, 8*Cout) phase matrix.

    Row    = neighbor offset (dd, dh, dw) in {0,1}^3, minor index ci.
    Column = output phase   (rd, rh, rw) in {0,1}^3, minor index co.
    Per spatial dim (k=3, s=2, p=1, op=1):
        out[2q + 0] = x[q]   * w[k=1]
        out[2q + 1] = x[q+1] * w[k=0] + x[q] * w[k=2]
    """
    cin, cout = w_t.shape[0], w_t.shape[1]
    tap = {(0, 0): 1, (1, 0): 2, (1, 1): 0}          # (phase r, offset d) -> k
    rows = []
    for dd in (0, 1):
        for dh in (0, 1):
            for dw in (0, 1):
                cols = []
                for rd in (0, 1):
                    for rh in (0, 1):
                        for rw in (0, 1):
                            ok = ((rd, dd) in tap and (rh, dh) in tap
                                  and (rw, dw) in tap)
                            if ok:
                                kd, kh, kw = tap[(rd, dd)], tap[(rh, dh)], tap[(rw, dw)]
                                cols.append(w_t[:, :, kd, kh, kw])
                            else:
                                cols.append(jnp.zeros((cin, cout), w_t.dtype))
                rows.append(jnp.concatenate(cols, axis=1))
    return jnp.concatenate(rows, axis=0).astype(jnp.float32)   # (8*Cin, 8*Cout)


def _pick_row_tile(m_rows, per_row_bytes, budget_bytes, max_tile):
    """Largest divisor of m_rows that is (8,128)-layout legal, <= max_tile, and
    whose double-buffered blocks fit budget_bytes."""
    best = None
    for t in range(1, m_rows + 1):
        if m_rows % t:
            continue
        if t % 8 and t != m_rows:        # second-to-last block dim: /8 or full
            continue
        if t > max_tile:
            continue
        if t * per_row_bytes > budget_bytes:
            continue
        best = t
    return best if best is not None else m_rows


# ---------------------------------------------------------------------------
# Forward pass
# ---------------------------------------------------------------------------
def deconv3d_forward(x_ncdhw, w_t, bias, gamma, beta, *, eps=1e-5):
    """DeConv3D forward.  Input/output are NCDHW (PyTorch convention)."""
    N, Cin, D, H, W = x_ncdhw.shape
    Cout = w_t.shape[1]
    # TODO(synk): the sub-pixel phase/tap table is specific to the module's
    # defaults (kernel_size=3, stride=2, padding=1, output_padding=1).
    assert w_t.shape[2:] == (3, 3, 3), "hard-coded k=3,s=2,p=1,op=1 decomposition"

    M = D * H * W                                    # coarse locations / batch elt

    # Row packing: `pack` consecutive spatial rows per vector row so the matmul
    # output fills all 128 lanes (no zero-padded columns) for small Cout.
    pc = 8 * Cout
    pack = 128 // pc if (pc <= 128 and 128 % pc == 0) else 1
    while pack > 1 and M % pack:
        pack //= 2
    KP = pack * 8 * Cin                              # contraction depth
    CP = 128 * ((pack * pc + 127) // 128)            # lane-padded output columns
    MR = M // pack                                   # packed vector rows / batch

    # Row tile: largest legal divisor of MR under a conservative double-buffered
    # VMEM budget (safe for v7x's 64 MiB physical VMEM) that still leaves >= 2
    # parallel grid steps for v7x's two TensorCores.
    per_row = 2 * (KP * 2 + CP * 4)                  # dbl-buffered bf16 in + f32 out
    budget = 24 * 1024 * 1024
    max_tile = MR if MR <= 4096 else 4096
    if N == 1:
        max_tile = min(max_tile, max(MR // 2, 1))
    TM = _pick_row_tile(MR, per_row, budget, max_tile)
    R = MR // TM

    # Layout plumbing: NCDHW -> NDHWC -> packed im2col; phase-packed weight/bias.
    x = jnp.transpose(x_ncdhw, (0, 2, 3, 4, 1)).astype(jnp.float32)
    patch = _im2col_2x2x2(x).reshape(N, MR, KP).astype(jnp.bfloat16)
    w_phase = _build_phase_weight(w_t)                           # (8*Cin, 8*Cout)
    w_mat = jnp.kron(jnp.eye(pack, dtype=jnp.float32), w_phase)  # block-diagonal
    w_mat = jnp.pad(w_mat, ((0, 0), (0, CP - pack * pc))).astype(jnp.bfloat16)
    b_cols = jnp.pad(jnp.tile(bias.astype(jnp.float32), 8 * pack),
                     (0, CP - pack * pc)).reshape(1, CP)

    # Kernel: sub-pixel transposed conv + fused bias + BN partial statistics.
    y, ssum, ssq = pl.pallas_call(
        _deconv_mm_kernel,
        out_shape=(jax.ShapeDtypeStruct((N, MR, CP), jnp.float32),
                   jax.ShapeDtypeStruct((N, R, 1, CP), jnp.float32),
                   jax.ShapeDtypeStruct((N, R, 1, CP), jnp.float32)),
        grid=(N, R),
        in_specs=[pl.BlockSpec((1, TM, KP), lambda n, r: (n, r, 0)),
                  pl.BlockSpec((KP, CP), lambda n, r: (0, 0)),
                  pl.BlockSpec((1, CP), lambda n, r: (0, 0))],
        out_specs=[pl.BlockSpec((1, TM, CP), lambda n, r: (n, r, 0)),
                   pl.BlockSpec((1, 1, 1, CP), lambda n, r: (n, r, 0, 0)),
                   pl.BlockSpec((1, 1, 1, CP), lambda n, r: (n, r, 0, 0))],
        compiler_params=pltpu.CompilerParams(
            dimension_semantics=("parallel", "parallel"),
            vmem_limit_bytes=48 * 1024 * 1024),
    )(patch, w_mat, b_cols)

    # Tiny global BN reduction (N*R*CP floats) folded into a per-channel affine.
    cnt = N * M * 8                                  # elems/channel = N*Do*Ho*Wo
    csum = ssum[..., :pack * pc].sum(axis=(0, 1, 2)).reshape(pack * 8, Cout).sum(0)
    csq = ssq[..., :pack * pc].sum(axis=(0, 1, 2)).reshape(pack * 8, Cout).sum(0)
    mean = csum / cnt
    var = csq / cnt - mean * mean                    # biased (training-mode) var
    inv = jax.lax.rsqrt(var + eps)
    scale_c = gamma.astype(jnp.float32) * inv
    shift_c = beta.astype(jnp.float32) - mean * scale_c

    # BN affine + LeakyReLU applied in plain JAX so XLA fuses them into the
    # (mandatory) phase de-interleave + NDHWC->NCDHW transpose copy.
    z = y[..., :pack * pc].reshape(N, M, 8, Cout)
    z = z * scale_c + shift_c
    z = jnp.where(z >= 0, z, 0.2 * z)
    z = z.reshape(N, D, H, W, 2, 2, 2, Cout)
    z = jnp.transpose(z, (0, 7, 1, 4, 2, 5, 3, 6))
    return z.reshape(N, Cout, 2 * D, 2 * H, 2 * W)


# ---------------------------------------------------------------------------
# Pure-JAX/XLA reference (NCDHW) for correctness checking
# ---------------------------------------------------------------------------
def _reference(x_ncdhw, w_t, bias, gamma, beta, *, s=2, p=1, op=1, K=3):
    w_conv = jnp.transpose(w_t[:, :, ::-1, ::-1, ::-1], (1, 0, 2, 3, 4))  # OIDHW
    y = jax.lax.conv_general_dilated(
        x_ncdhw.astype(jnp.float32), w_conv.astype(jnp.float32),
        window_strides=(1, 1, 1),
        padding=[(K - 1 - p, K - 1 - p + op)] * 3,
        lhs_dilation=(s, s, s),
        dimension_numbers=("NCDHW", "OIDHW", "NCDHW"),
        precision=jax.lax.Precision.HIGHEST)
    y = y + bias[None, :, None, None, None]
    mean = y.mean(axis=(0, 2, 3, 4), keepdims=True)
    var = ((y - mean) ** 2).mean(axis=(0, 2, 3, 4), keepdims=True)
    z = (y - mean) * jax.lax.rsqrt(var + 1e-5)
    z = z * gamma[None, :, None, None, None] + beta[None, :, None, None, None]
    return jnp.where(z >= 0, z, 0.2 * z)


if __name__ == "__main__":
    # Small shapes consistent with the module: batch=2, Cin=4, Cout=8, spatial=8.
    N, Cin, Cout, D, H, W, K = 2, 4, 8, 8, 8, 8, 3

    key = jax.random.PRNGKey(0)
    k_x, k_w, k_b, k_g, k_bt = jax.random.split(key, 5)

    # Deterministic, PyTorch-style uniform init for ConvTranspose3d params.
    bound = 1.0 / math.sqrt(Cin * K ** 3)
    w_t = jax.random.uniform(k_w, (Cin, Cout, K, K, K), jnp.float32, -bound, bound)
    bias = jax.random.uniform(k_b, (Cout,), jnp.float32, -bound, bound)
    # BatchNorm affine params (perturbed so the affine path is exercised).
    gamma = 1.0 + 0.1 * jax.random.uniform(k_g, (Cout,), jnp.float32, -1.0, 1.0)
    beta = 0.1 * jax.random.normal(k_bt, (Cout,), jnp.float32)

    x = jax.random.normal(k_x, (N, Cin, D, H, W), jnp.float32)

    out = jax.block_until_ready(deconv3d_forward(x, w_t, bias, gamma, beta))
    ref = jax.block_until_ready(_reference(x, w_t, bias, gamma, beta))

    assert out.shape == (N, Cout, 2 * D, 2 * H, 2 * W), out.shape
    # bf16 MXU operands (f32 accumulation) leave a few-1e-3 relative error on the
    # BN-normalized output; compare to the f32 HIGHEST-precision reference at 2e-2.
    max_err = float(jnp.max(jnp.abs(out - ref)))
    assert jnp.allclose(out, ref, rtol=2e-2, atol=2e-2), max_err

    print("KERNEL_OK")
</pallas_src>

<mosaic_0001>
module attributes {stable_mosaic.version = 11 : i64} {
  func.func @_deconv_mm_kernel(%arg0: i32, %arg1: i32, %arg2: memref<1x256x64xbf16, #tpu.memory_space<vmem>>, %arg3: memref<64x128xbf16, #tpu.memory_space<vmem>>, %arg4: memref<1x128xf32, #tpu.memory_space<vmem>>, %arg5: memref<1x256x128xf32, #tpu.memory_space<vmem>>, %arg6: memref<1x1x1x128xf32, #tpu.memory_space<vmem>>, %arg7: memref<1x1x1x128xf32, #tpu.memory_space<vmem>>) attributes {dimension_semantics = [#tpu.dimension_semantics<parallel>, #tpu.dimension_semantics<parallel>], iteration_bounds = array<i64: 2, 1>, scalar_prefetch = 0 : i64, scratch_operands = 0 : i64, tpu.core_type = #tpu.core_type<tc>, window_params = [{transform_indices = @transform_0, window_bounds = array<i64: 1, 256, 64>}, {pipeline_mode = #tpu.pipeline_mode<synchronous>, transform_indices = @transform_1, window_bounds = array<i64: 64, 128>}, {pipeline_mode = #tpu.pipeline_mode<synchronous>, transform_indices = @transform_2, window_bounds = array<i64: 1, 128>}, {transform_indices = @transform_3, window_bounds = array<i64: 1, 256, 128>}, {transform_indices = @transform_4, window_bounds = array<i64: 1, 1, 1, 128>}, {transform_indices = @transform_5, window_bounds = array<i64: 1, 1, 1, 128>}]} {
    %c0 = arith.constant 0 : index
    %c0_0 = arith.constant 0 : index
    %c0_1 = arith.constant 0 : index
    %0 = vector.load %arg2[%c0, %c0_0, %c0_1] : memref<1x256x64xbf16, #tpu.memory_space<vmem>>, vector<1x256x64xbf16>
    %1 = vector.shape_cast %0 : vector<1x256x64xbf16> to vector<256x64xbf16>
    %c0_2 = arith.constant 0 : index
    %c0_3 = arith.constant 0 : index
    %2 = vector.load %arg3[%c0_2, %c0_3] : memref<64x128xbf16, #tpu.memory_space<vmem>>, vector<64x128xbf16>
    %cst = arith.constant dense<0.000000e+00> : vector<256x128xf32>
    %3 = tpu.matmul %1, %2, %cst {dimension_numbers = #tpu.dot_dimension_numbers<[1], [0], [0], [1], [0, 0, 1, 1], [], []>} : vector<256x64xbf16>, vector<64x128xbf16>, vector<256x128xf32> -> vector<256x128xf32>
    %c0_4 = arith.constant 0 : index
    %c0_5 = arith.constant 0 : index
    %4 = vector.load %arg4[%c0_4, %c0_5] : memref<1x128xf32, #tpu.memory_space<vmem>>, vector<1x128xf32>
    %5 = vector.broadcast %4 : vector<1x128xf32> to vector<256x128xf32>
    %6 = arith.addf %3, %5 : vector<256x128xf32>
    %7 = vector.shape_cast %6 : vector<256x128xf32> to vector<1x256x128xf32>
    %c0_6 = arith.constant 0 : index
    %c0_7 = arith.constant 0 : index
    %c0_8 = arith.constant 0 : index
    %8 = vector.load %arg5[%c0_6, %c0_7, %c0_8] : memref<1x256x128xf32, #tpu.memory_space<vmem>>, vector<1x256x128xf32>
    tpu.vector_store %arg5[%c0_6, %c0_7, %c0_8], %7 {strides = array<i32>} : memref<1x256x128xf32, #tpu.memory_space<vmem>>, vector<1x256x128xf32>,
    %cst_9 = arith.constant dense<0.000000e+00> : vector<128xf32>
    %9 = vector.multi_reduction <add>, %6, %cst_9 [0] : vector<256x128xf32> to vector<128xf32>
    %10 = vector.shape_cast %9 : vector<128xf32> to vector<1x128xf32>
    %11 = vector.shape_cast %10 : vector<1x128xf32> to vector<1x1x1x128xf32>
    %c0_10 = arith.constant 0 : index
    %c0_11 = arith.constant 0 : index
    %c0_12 = arith.constant 0 : index
    %c0_13 = arith.constant 0 : index
    %12 = vector.load %arg6[%c0_10, %c0_11, %c0_12, %c0_13] : memref<1x1x1x128xf32, #tpu.memory_space<vmem>>, vector<1x1x1x128xf32>
    tpu.vector_store %arg6[%c0_10, %c0_11, %c0_12, %c0_13], %11 {strides = array<i32>} : memref<1x1x1x128xf32, #tpu.memory_space<vmem>>, vector<1x1x1x128xf32>,
    %13 = arith.mulf %6, %6 : vector<256x128xf32>
    %cst_14 = arith.constant dense<0.000000e+00> : vector<128xf32>
    %14 = vector.multi_reduction <add>, %13, %cst_14 [0] : vector<256x128xf32> to vector<128xf32>
    %15 = vector.shape_cast %14 : vector<128xf32> to vector<1x128xf32>
    %16 = vector.shape_cast %15 : vector<1x128xf32> to vector<1x1x1x128xf32>
    %c0_15 = arith.constant 0 : index
    %c0_16 = arith.constant 0 : index
    %c0_17 = arith.constant 0 : index
    %c0_18 = arith.constant 0 : index
    %17 = vector.load %arg7[%c0_15, %c0_16, %c0_17, %c0_18] : memref<1x1x1x128xf32, #tpu.memory_space<vmem>>, vector<1x1x1x128xf32>
    tpu.vector_store %arg7[%c0_15, %c0_16, %c0_17, %c0_18], %16 {strides = array<i32>} : memref<1x1x1x128xf32, #tpu.memory_space<vmem>>, vector<1x1x1x128xf32>,
    return
  }
  func.func @transform_0(%arg0: i32, %arg1: i32) -> (i32, i32, i32) {
    %c0_i32 = arith.constant 0 : i32
    %c0_i32_0 = arith.constant 0 : i32
    return %arg0, %arg1, %c0_i32 : i32, i32, i32
  }
  func.func @transform_1(%arg0: i32, %arg1: i32) -> (i32, i32) {
    %c0_i32 = arith.constant 0 : i32
    %c0_i32_0 = arith.constant 0 : i32
    %c0_i32_1 = arith.constant 0 : i32
    return %c0_i32, %c0_i32_0 : i32, i32
  }
  func.func @transform_2(%arg0: i32, %arg1: i32) -> (i32, i32) {
    %c0_i32 = arith.constant 0 : i32
    %c0_i32_0 = arith.constant 0 : i32
    %c0_i32_1 = arith.constant 0 : i32
    return %c0_i32, %c0_i32_0 : i32, i32
  }
  func.func @transform_3(%arg0: i32, %arg1: i32) -> (i32, i32, i32) {
    %c0_i32 = arith.constant 0 : i32
    %c0_i32_0 = arith.constant 0 : i32
    return %arg0, %arg1, %c0_i32 : i32, i32, i32
  }
  func.func @transform_4(%arg0: i32, %arg1: i32) -> (i32, i32, i32, i32) {
    %c0_i32 = arith.constant 0 : i32
    %c0_i32_0 = arith.constant 0 : i32
    %c0_i32_1 = arith.constant 0 : i32
    return %arg0, %arg1, %c0_i32, %c0_i32_0 : i32, i32, i32, i32
  }
  func.func @transform_5(%arg0: i32, %arg1: i32) -> (i32, i32, i32, i32) {
    %c0_i32 = arith.constant 0 : i32
    %c0_i32_0 = arith.constant 0 : i32
    %c0_i32_1 = arith.constant 0 : i32
    return %arg0, %arg1, %c0_i32, %c0_i32_0 : i32, i32, i32, i32
  }
}

</mosaic_0001>

<llo_original>
// kernel: tpu_custom_call.1
$region0: #{tpu_custom_call.1}
  #allocation0 [shape = 'u32[]', space=smem, size = 0x4, offset = 0x4, fixed_abs, tag = 'smem constant byte address 0x4 - core index']
  #allocation1 [shape = 'u32[144,128]{1,0:T(1,128)}', space=vmem, size = 0x12000, scoped, tag = 'internal scratch']
  %s0 = inlined_call_operand.vmem [shape: bf16[2,256,64], index: 0, kind: input, shape index: {}]
  %s1 = inlined_call_operand.vmem [shape: bf16[64,128], index: 1, kind: input, shape index: {}]
  %s2 = inlined_call_operand.vmem [shape: f32[1,128], index: 2, kind: input, shape index: {}]
  %s3 = inlined_call_operand.hbm [shape: f32[2,256,128], index: 3, kind: output, shape index: {0}]
  %s4 = inlined_call_operand.hbm [shape: f32[2,1,1,128], index: 4, kind: output, shape index: {1}]
  %s5 = inlined_call_operand.hbm [shape: f32[2,1,1,128], index: 5, kind: output, shape index: {2}]
  %6 = xla_tuple %s3, %s4, %s5
  %s7 = sld [smem:[#allocation0]]
  $region61: #{tpu_custom_call.1} parent=0
    _
  %s9 = ssub.s32 1, %s7
  %s10 = scalar_select 0, %s9, %s7
  $region1: #{tpu_custom_call.1} parent=0
    #allocation2 [shape = 'u8[262144]{0}', space=vmem, size = 0x40000, scoped, tag = 'output window, operand 0']
    #allocation3 [shape = 's32[2]{0}', space=sflag, size = 0x8, scoped, tag = 'scoped memory for tpu_custom_call.1']
    #allocation4 [shape = 'u8[1024]{0}', space=vmem, size = 0x400, scoped, tag = 'output window, operand 1']
    #allocation5 [shape = 's32[2]{0}', space=sflag, size = 0x8, scoped, tag = 'scoped memory for tpu_custom_call.1']
    #allocation6 [shape = 'u8[1024]{0}', space=vmem, size = 0x400, scoped, tag = 'output window, operand 2']
    %11 = vsyncpa [#allocation3], 0
    %s12 = scalar_lea.sflag [#allocation3], 1
    %13 = vsyncpa %s12, 0
    %14 = vsyncpa [#allocation5], 0
    %s15 = scalar_lea.sflag [#allocation5], 1
    %16 = vsyncpa %s15, 0
    loop: start=0, step=1, limit=4
    $region2: #{tpu_custom_call.1} parent=1 // loop_pre_header
      _
    $region3: #{tpu_custom_call.1} parent=1 // loop_header
      %s18 = sphi 0, %s22
      %p19 = scmp.ge.s32.totalorder %s18, 4
      %s25 = sphi 0, %s37
      %s26 = sphi 0, %s33
      %s27 = sphi 0, %s25
      %s28 = sphi 0, %s26
      %s29 = sphi 0, %s27
      %s30 = sphi 0, %s28
      %s42 = sphi 0, %s44
      %s45 = sphi 0, %s42
      %s46 = sphi 0, %s45
      %s62 = sphi 0, %s46
      %s66 = sphi 0, %s66
      %s68 = sphi 0, %s66
      %s69 = sphi 0, %s68
      %s83 = sphi 0, %s69
      %s87 = sphi 0, %s87
      %s89 = sphi 0, %s87
      %s90 = sphi 0, %s89
      %s104 = sphi 0, %s90
      %s112 = sphi 0, %s114
      %s115 = sphi 0, %s112
      %s116 = sphi 0, %s115
      %s132 = sphi 0, %s116
      %s140 = sphi 0, %s142
      %s143 = sphi 0, %s140
      %s144 = sphi 0, %s143
      %s160 = sphi 0, %s144
      %s168 = sphi 0, %s170
      %s171 = sphi 0, %s168
      %s172 = sphi 0, %s171
      %s188 = sphi 0, %s172
    $region4: #{tpu_custom_call.1} parent=1 // loop_header_branch
      %21 = sbr.rel (%p19) target = $region8
    $region5: #{tpu_custom_call.1} parent=1 // loop_body
      %s23 = ssub.s32 %s18, 1
      %s24 = ssub.s32 %s18, 2
      %s31 = sadd.s32 1, %s26
      %p32 = scmp.ge.s32.totalorder %s31, 1
      %s33 = scalar_select %p32, 0, %s31
      %s34 = sadd.s32 1, %s25
      %s35 = scalar_select %p32, %s34, %s25
      %p36 = scmp.ge.s32.totalorder %s35, 2
      %s37 = scalar_select %p36, 0, %s35
      %s38 = ssub.s32 %s25, %s37
      %s39 = ssub.s32 %s26, %s33
      %s40 = sor.u32 %s38, %s39
      %p41 = scmp.eq.s32.totalorder %s40, 0
      %s43 = sadd.s32 %s42, 1
      %s44 = scalar_select %p41, %s42, %s43
      %p47 = pneg %p41
      %p48 = scmp.eq.s32.totalorder %s18, 1
      %p49 = por %p47, %p48
      %p50 = scmp.ne.s32.totalorder %s42, %s45
      %p51 = scmp.eq.s32.totalorder %s18, 0
      %p52 = por %p50, %p51
      %p53 = scmp.ne.s32.totalorder %s42, %s45
      %p54 = scmp.eq.s32.totalorder %s23, 1
      %p55 = por %p53, %p54
      %p56 = scmp.ne.s32.totalorder %s45, %s46
      %p57 = scmp.eq.s32.totalorder %s23, 0
      %p58 = por %p56, %p57
      %p59 = scmp.ne.s32.totalorder %s45, %s46
      %p60 = scmp.eq.s32.totalorder %s24, 1
      %p61 = por %p59, %p60
      %p63 = scmp.ne.s32.totalorder %s46, %s62
      %p64 = scmp.eq.s32.totalorder %s24, 0
      %p65 = por %p63, %p64
      %s67 = sadd.s32 %s66, 1
      %p70 = scmp.eq.s32.totalorder %s18, 1
      %p71 = scmp.ne.s32.totalorder %s66, %s68
      %p72 = scmp.eq.s32.totalorder %s18, 0
      %p73 = por %p71, %p72
      %p74 = scmp.ne.s32.totalorder %s66, %s68
      %p75 = scmp.eq.s32.totalorder %s23, 1
      %p76 = por %p74, %p75
      %p77 = scmp.ne.s32.totalorder %s68, %s69
      %p78 = scmp.eq.s32.totalorder %s23, 0
      %p79 = por %p77, %p78
      %p80 = scmp.ne.s32.totalorder %s68, %s69
      %p81 = scmp.eq.s32.totalorder %s24, 1
      %p82 = por %p80, %p81
      %p84 = scmp.ne.s32.totalorder %s69, %s83
      %p85 = scmp.eq.s32.totalorder %s24, 0
      %p86 = por %p84, %p85
      %s88 = sadd.s32 %s87, 1
      %p91 = scmp.eq.s32.totalorder %s18, 1
      %p92 = scmp.ne.s32.totalorder %s87, %s89
      %p93 = scmp.eq.s32.totalorder %s18, 0
      %p94 = por %p92, %p93
      %p95 = scmp.ne.s32.totalorder %s87, %s89
      %p96 = scmp.eq.s32.totalorder %s23, 1
      %p97 = por %p95, %p96
      %p98 = scmp.ne.s32.totalorder %s89, %s90
      %p99 = scmp.eq.s32.totalorder %s23, 0
      %p100 = por %p98, %p99
      %p101 = scmp.ne.s32.totalorder %s89, %s90
      %p102 = scmp.eq.s32.totalorder %s24, 1
      %p103 = por %p101, %p102
      %p105 = scmp.ne.s32.totalorder %s90, %s104
      %p106 = scmp.eq.s32.totalorder %s24, 0
      %p107 = por %p105, %p106
      %s108 = ssub.s32 %s25, %s37
      %s109 = ssub.s32 %s26, %s33
      %s110 = sor.u32 %s108, %s109
      %p111 = scmp.eq.s32.totalorder %s110, 0
      %s113 = sadd.s32 %s112, 1
      %s114 = scalar_select %p111, %s112, %s113
      %p117 = pneg %p111
      %p118 = scmp.eq.s32.totalorder %s18, 1
      %p119 = por %p117, %p118
      %p120 = scmp.ne.s32.totalorder %s112, %s115
      %p121 = scmp.eq.s32.totalorder %s18, 0
      %p122 = por %p120, %p121
      %p123 = scmp.ne.s32.totalorder %s112, %s115
      %p124 = scmp.eq.s32.totalorder %s23, 1
      %p125 = por %p123, %p124
      %p126 = scmp.ne.s32.totalorder %s115, %s116
      %p127 = scmp.eq.s32.totalorder %s23, 0
      %p128 = por %p126, %p127
      %p129 = scmp.ne.s32.totalorder %s115, %s116
      %p130 = scmp.eq.s32.totalorder %s24, 1
      %p131 = por %p129, %p130
      %p133 = scmp.ne.s32.totalorder %s116, %s132
      %p134 = scmp.eq.s32.totalorder %s24, 0
      %p135 = por %p133, %p134
      %s136 = ssub.s32 %s25, %s37
      %s137 = ssub.s32 %s26, %s33
      %s138 = sor.u32 %s136, %s137
      %p139 = scmp.eq.s32.totalorder %s138, 0
      %s141 = sadd.s32 %s140, 1
      %s142 = scalar_select %p139, %s140, %s141
      %p145 = pneg %p139
      %p146 = scmp.eq.s32.totalorder %s18, 1
      %p147 = por %p145, %p146
      %p148 = scmp.ne.s32.totalorder %s140, %s143
      %p149 = scmp.eq.s32.totalorder %s18, 0
      %p150 = por %p148, %p149
      %p151 = scmp.ne.s32.totalorder %s140, %s143
      %p152 = scmp.eq.s32.totalorder %s23, 1
      %p153 = por %p151, %p152
      %p154 = scmp.ne.s32.totalorder %s143, %s144
      %p155 = scmp.eq.s32.totalorder %s23, 0
      %p156 = por %p154, %p155
      %p157 = scmp.ne.s32.totalorder %s143, %s144
      %p158 = scmp.eq.s32.totalorder %s24, 1
      %p159 = por %p157, %p158
      %p161 = scmp.ne.s32.totalorder %s144, %s160
      %p162 = scmp.eq.s32.totalorder %s24, 0
      %p163 = por %p161, %p162
      %s164 = ssub.s32 %s25, %s37
      %s165 = ssub.s32 %s26, %s33
      %s166 = sor.u32 %s164, %s165
      %p167 = scmp.eq.s32.totalorder %s166, 0
      %s169 = sadd.s32 %s168, 1
      %s170 = scalar_select %p167, %s168, %s169
      %p173 = pneg %p167
      %p174 = scmp.eq.s32.totalorder %s18, 1
      %p175 = por %p173, %p174
      %p176 = scmp.ne.s32.totalorder %s168, %s171
      %p177 = scmp.eq.s32.totalorder %s18, 0
      %p178 = por %p176, %p177
      %p179 = scmp.ne.s32.totalorder %s168, %s171
      %p180 = scmp.eq.s32.totalorder %s23, 1
      %p181 = por %p179, %p180
      %p182 = scmp.ne.s32.totalorder %s171, %s172
      %p183 = scmp.eq.s32.totalorder %s23, 0
      %p184 = por %p182, %p183
      %p185 = scmp.ne.s32.totalorder %s171, %s172
      %p186 = scmp.eq.s32.totalorder %s24, 1
      %p187 = por %p185, %p186
      %p189 = scmp.ne.s32.totalorder %s172, %s188
      %p190 = scmp.eq.s32.totalorder %s24, 0
      %p191 = por %p189, %p190
      %p192 = scmp.le.s32.totalorder 1, %s18
      %p193 = scmp.lt.s32.totalorder %s18, 3
      %p194 = pnand %p192, %p193
      %p195 = pneg %p194
      // Predicated region
      $region9: #{tpu_custom_call.1} parent=5 // pred_check
        _
      $region10: #{tpu_custom_call.1} parent=5 // pred_check_branch
        %197 = sbr.rel (%p194) target = $region12
      $region11: #{tpu_custom_call.1} parent=5 // pred_region
        %s198 = ssub.s32 %s18, 1
        // Predicated region
        $region13: #{tpu_custom_call.1} parent=11 // pred_check
          %p199 = pneg %p79
        $region14: #{tpu_custom_call.1} parent=11 // pred_check_branch
          %201 = sbr.rel (%p199) target = $region16
        $region15: #{tpu_custom_call.1} parent=11 // pred_region
          _
        $region16: #{tpu_custom_call.1} parent=11 // pred_fallthru
          _
        // Predicated region
        $region17: #{tpu_custom_call.1} parent=11 // pred_check
          %p202 = pneg %p100
        $region18: #{tpu_custom_call.1} parent=11 // pred_check_branch
          %204 = sbr.rel (%p202) target = $region20
        $region19: #{tpu_custom_call.1} parent=11 // pred_region
          _
        $region20: #{tpu_custom_call.1} parent=11 // pred_fallthru
          _
      $region12: #{tpu_custom_call.1} parent=5 // pred_fallthru
        _
      %p205 = scmp.lt.s32.totalorder %s18, 2
      // Predicated region
      $region21: #{tpu_custom_call.1} parent=5 // pred_check
        %p206 = pneg %p205
      $region22: #{tpu_custom_call.1} parent=5 // pred_check_branch
        %208 = sbr.rel (%p206) target = $region24
      $region23: #{tpu_custom_call.1} parent=5 // pred_region
        // Predicated region
        $region25: #{tpu_custom_call.1} parent=23 // pred_check
          %p209 = pneg %p52
        $region26: #{tpu_custom_call.1} parent=23 // pred_check_branch
          %211 = sbr.rel (%p209) target = $region28
        $region27: #{tpu_custom_call.1} parent=23 // pred_region
          %s212 = smul.u32 32, %s26
          %p213 = scmp.lt.s32.totalorder %s25, 1
          %s214 = scalar_select %p213, %s25, 1
          %p215 = scmp.lt.s32.totalorder %s212, 31
          %s216 = scalar_select %p215, %s212, 31
          %s217 = smul.addr %s214, 32
          %s218 = sadd.s32 %s216, %s217
          %s219 = smul.addr %s218, 4
          %s220 = scalar_lea.vmem %s0, %s219
          %s221 = smul.u32 32, %s26
        $region28: #{tpu_custom_call.1} parent=23 // pred_fallthru
          _
      $region24: #{tpu_custom_call.1} parent=5 // pred_fallthru
        _
      %p222 = scmp.le.s32.totalorder 1, %s18
      %p223 = scmp.lt.s32.totalorder %s18, 3
      %p224 = pnand %p222, %p223
      %p225 = pneg %p224
      // Predicated region
      $region29: #{tpu_custom_call.1} parent=5 // pred_check
        _
      $region30: #{tpu_custom_call.1} parent=5 // pred_check_branch
        %227 = sbr.rel (%p224) target = $region32
      $region31: #{tpu_custom_call.1} parent=5 // pred_region
        %s228 = ssub.s32 %s18, 1
        %s229 = smul.u32 32, %s28
        %p230 = scmp.lt.s32.totalorder %s27, 1
        %s231 = scalar_select %p230, %s27, 1
        %p232 = scmp.lt.s32.totalorder %s229, 31
        %s233 = scalar_select %p232, %s229, 31
        %s234 = smul.addr %s231, 32
        %s235 = sadd.s32 %s233, %s234
        %s236 = smul.addr %s235, 4
        %s237 = scalar_lea.vmem %s0, %s236
        %p238 = pneg %p58
        %p239 = pneg %p55
        %p240 = pneg %p79
        %p241 = pneg %p76
        %p242 = pneg %p100
        %p243 = pneg %p97
        %p244 = pneg %p128
        %p245 = pneg %p125
        %s246 = sand.u32 %s115, 1
        %s247 = scalar_lea.sflag [#allocation3], %s246
        %s248 = sand.u32 %s115, 1
        %s249 = smul.addr %s248, 256
        %s250 = scalar_lea.vmem [#allocation2], %s249
        %p251 = pneg %p156
        %p252 = pneg %p153
        %s253 = sand.u32 %s23, 1
        %s254 = scalar_lea.sflag [#allocation5], %s253
        %s255 = sand.u32 %s143, 1
        %s256 = scalar_lea.vmem [#allocation4], %s255
        %p257 = pneg %p184
        %p258 = pneg %p181
        %s259 = sand.u32 %s23, 1
        %s260 = scalar_lea.sflag [#allocation5], %s259
        %s261 = sand.u32 %s171, 1
        %s262 = scalar_lea.vmem [#allocation6], %s261
        %s263 = smul.u32 32, %s28
        %p264 = scmp.lt.s32.totalorder %s27, 1
        %s265 = scalar_select %p264, %s27, 1
        %p266 = scmp.lt.s32.totalorder %s263, 31
        %s267 = scalar_select %p266, %s263, 31
        %s268 = smul.addr %s265, 32
        %s269 = sadd.s32 %s267, %s268
        %s270 = smul.addr %s269, 4
        %s271 = scalar_lea.vmem %s0, %s270
        %s272 = smul.u32 32, %s28
        %s273 = smul.u32 32, %s28
        %v275 = vld [vmem:[%s271] sm:$0xf]
        %v276 = vld [vmem:[%s271 + $0x4] sm:$0xf]
        %v277 = vld [vmem:[%s271 + $0x8] sm:$0xf]
        %v278 = vld [vmem:[%s271 + $0xc] sm:$0xf]
        %v279 = vld [vmem:[%s271 + $0x10] sm:$0xf]
        %v280 = vld [vmem:[%s271 + $0x14] sm:$0xf]
        %v281 = vld [vmem:[%s271 + $0x18] sm:$0xf]
        %v282 = vld [vmem:[%s271 + $0x1c] sm:$0xf]
        %v283 = vld [vmem:[%s271 + $0x20] sm:$0xf]
        %v284 = vld [vmem:[%s271 + $0x24] sm:$0xf]
        %v285 = vld [vmem:[%s271 + $0x28] sm:$0xf]
        %v286 = vld [vmem:[%s271 + $0x2c] sm:$0xf]
        %v287 = vld [vmem:[%s271 + $0x30] sm:$0xf]
        %v288 = vld [vmem:[%s271 + $0x34] sm:$0xf]
        %v289 = vld [vmem:[%s271 + $0x38] sm:$0xf]
        %v290 = vld [vmem:[%s271 + $0x3c] sm:$0xf]
        %v291 = vld [vmem:[%s271 + $0x40] sm:$0xf]
        %v292 = vld [vmem:[%s271 + $0x44] sm:$0xf]
        %v293 = vld [vmem:[%s271 + $0x48] sm:$0xf]
        %v294 = vld [vmem:[%s271 + $0x4c] sm:$0xf]
        %v295 = vld [vmem:[%s271 + $0x50] sm:$0xf]
        %v296 = vld [vmem:[%s271 + $0x54] sm:$0xf]
        %v297 = vld [vmem:[%s271 + $0x58] sm:$0xf]
        %v298 = vld [vmem:[%s271 + $0x5c] sm:$0xf]
        %v299 = vld [vmem:[%s271 + $0x60] sm:$0xf]
        %v300 = vld [vmem:[%s271 + $0x64] sm:$0xf]
        %v301 = vld [vmem:[%s271 + $0x68] sm:$0xf]
        %v302 = vld [vmem:[%s271 + $0x6c] sm:$0xf]
        %v303 = vld [vmem:[%s271 + $0x70] sm:$0xf]
        %v304 = vld [vmem:[%s271 + $0x74] sm:$0xf]
        %v305 = vld [vmem:[%s271 + $0x78] sm:$0xf]
        %v306 = vld [vmem:[%s271 + $0x7c] sm:$0xf]
        %v307 = vld [vmem:[%s1] sm:$0xf]
        %v308 = vld [vmem:[%s1 + $0x4] sm:$0xf]
        %v309 = vld [vmem:[%s1 + $0x8] sm:$0xf]
        %v310 = vld [vmem:[%s1 + $0xc] sm:$0xf]
        %v311 = vld [vmem:[%s1 + $0x10] sm:$0xf]
        %v312 = vld [vmem:[%s1 + $0x14] sm:$0xf]
        %v313 = vld [vmem:[%s1 + $0x18] sm:$0xf]
        %v314 = vld [vmem:[%s1 + $0x1c] sm:$0xf]
        %v315 = vld [vmem:[%s2] sm:$0x1]
        %v317 = vlaneseq
        %v318 = vshrl.u32 %v317, 7
        %v319 = vsub.s32 0, %v318
        %v320 = vrot.slane %v315, %v319
        %v354 = vunpack.c.l.b16 %v275
        %v355 = vunpack.c.l.b16 %v276
        %v356 = vunpack.c.l.b16 %v277
        %v357 = vunpack.c.l.b16 %v278
        %v358 = vunpack.c.l.b16 %v279
        %v359 = vunpack.c.l.b16 %v280
        %v360 = vunpack.c.l.b16 %v281
        %v361 = vunpack.c.l.b16 %v282
        %v362 = vunpack.c.l.b16 %v283
        %v363 = vunpack.c.l.b16 %v284
        %v364 = vunpack.c.l.b16 %v285
        %v365 = vunpack.c.l.b16 %v286
        %v366 = vunpack.c.l.b16 %v287
        %v367 = vunpack.c.l.b16 %v288
        %v368 = vunpack.c.l.b16 %v289
        %v369 = vunpack.c.l.b16 %v290
        %v370 = vunpack.c.l.b16 %v291
        %v371 = vunpack.c.l.b16 %v292
        %v372 = vunpack.c.l.b16 %v293
        %v373 = vunpack.c.l.b16 %v294
        %v374 = vunpack.c.l.b16 %v295
        %v375 = vunpack.c.l.b16 %v296
        %v376 = vunpack.c.l.b16 %v297
        %v377 = vunpack.c.l.b16 %v298
        %v378 = vunpack.c.l.b16 %v299
        %v379 = vunpack.c.l.b16 %v300
        %v380 = vunpack.c.l.b16 %v301
        %v381 = vunpack.c.l.b16 %v302
        %v382 = vunpack.c.l.b16 %v303
        %v383 = vunpack.c.l.b16 %v304
        %v384 = vunpack.c.l.b16 %v305
        %v385 = vunpack.c.l.b16 %v306
        %v386 = vpack.c.b16 %v355, %v354
        %v387 = vpack.c.b16 %v357, %v356
        %v388 = vpack.c.b16 %v359, %v358
        %v389 = vpack.c.b16 %v361, %v360
        %v390 = vpack.c.b16 %v363, %v362
        %v391 = vpack.c.b16 %v365, %v364
        %v392 = vpack.c.b16 %v367, %v366
        %v393 = vpack.c.b16 %v369, %v368
        %v394 = vpack.c.b16 %v371, %v370
        %v395 = vpack.c.b16 %v373, %v372
        %v396 = vpack.c.b16 %v375, %v374
        %v397 = vpack.c.b16 %v377, %v376
        %v398 = vpack.c.b16 %v379, %v378
        %v399 = vpack.c.b16 %v381, %v380
        %v400 = vpack.c.b16 %v383, %v382
        %v401 = vpack.c.b16 %v385, %v384
        %v410 = vunpack.c.l.b16 %v307
        %v411 = vunpack.c.l.b16 %v308
        %v412 = vunpack.c.l.b16 %v309
        %v413 = vunpack.c.l.b16 %v310
        %v414 = vunpack.c.l.b16 %v311
        %v415 = vunpack.c.l.b16 %v312
        %v416 = vunpack.c.l.b16 %v313
        %v417 = vunpack.c.l.b16 %v314
        %v418 = vpack.c.b16 %v411, %v410
        %v419 = vpack.c.b16 %v413, %v412
        %v420 = vpack.c.b16 %v415, %v414
        %v421 = vpack.c.b16 %v417, %v416
        %vm426 = vcmask 523264
        %v428 = vsel %vm426, %v386, 0
        %v431 = vsel %vm426, %v387, 0
        %v434 = vsel %vm426, %v388, 0
        %v437 = vsel %vm426, %v389, 0
        %v440 = vsel %vm426, %v390, 0
        %v443 = vsel %vm426, %v391, 0
        %v446 = vsel %vm426, %v392, 0
        %v449 = vsel %vm426, %v393, 0
        %v452 = vsel %vm426, %v394, 0
        %v455 = vsel %vm426, %v395, 0
        %v458 = vsel %vm426, %v396, 0
        %v461 = vsel %vm426, %v397, 0
        %v464 = vsel %vm426, %v398, 0
        %v467 = vsel %vm426, %v399, 0
        %v470 = vsel %vm426, %v400, 0
        %v473 = vsel %vm426, %v401, 0
        %475 = vmatprep.subr.bf16.mxu0 0
        %476 = vmatpush1.bf16.msra.mxu0 %v418
        %477 = vmatprep.subr.bf16.mxu0 0
        %478 = vmatpush1.bf16.msra.mxu0 %v419
        %479 = vmatprep.subr.bf16.mxu0 0
        %480 = vmatpush1.bf16.msra.mxu0 %v420
        %481 = vmatprep.subr.bf16.mxu0 0
        %482 = vmatpush1.bf16.msra.mxu0 %v421
        %483 = vmatprep.subr.bf16.mxu0 0
        %484 = vmatpush1.bf16.msra.mxu0 0
        %485 = vmatprep.subr.bf16.mxu0 0
        %486 = vmatpush1.bf16.msra.mxu0 0
        %487 = vmatprep.subr.bf16.mxu0 0
        %488 = vmatpush1.bf16.msra.mxu0 0
        %489 = vmatprep.subr.bf16.mxu0 0
        %490 = vmatpush1.bf16.msra.mxu0 0
        %491 = vmatprep.subr.bf16.mxu0 0
        %492 = vmatpush1.bf16.msra.mxu0 0
        %493 = vmatprep.subr.bf16.mxu0 0
        %494 = vmatpush1.bf16.msra.mxu0 0
        %495 = vmatprep.subr.bf16.mxu0 0
        %496 = vmatpush1.bf16.msra.mxu0 0
        %497 = vmatprep.subr.bf16.mxu0 0
        %498 = vmatpush1.bf16.msra.mxu0 0
        %499 = vmatprep.subr.bf16.mxu0 0
        %500 = vmatpush1.bf16.msra.mxu0 0
        %501 = vmatprep.subr.bf16.mxu0 0
        %502 = vmatpush1.bf16.msra.mxu0 0
        %503 = vmatprep.subr.bf16.mxu0 0
        %504 = vmatpush1.bf16.msra.mxu0 0
        %505 = vmatprep.subr.bf16.mxu0 0
        %506 = vmatpush1.bf16.msra.mxu0 0
        %507 = vmatprep.mubr.bf16.mxu0 0
        %508 = vmatmul.mubr.bf16.gmra.mrb[0].mxu0 %v428
        %v509 = vpop.f32.mrb[0].mxu0
        %v510 = vadd.f32 %v320, %v509
        %v511 = vpop.f32.mrb[0].mxu0
        %v512 = vpop.f32.mrb[0].mxu0
        %v513 = vadd.f32 %v320, %v512
        %v514 = vpop.f32.mrb[0].mxu0
        %515 = vmatprep.mubr.bf16.mxu0 0
        %516 = vmatmul.mubr.bf16.gmra.mrb[0].mxu0 %v431
        %v517 = vpop.f32.mrb[0].mxu0
        %v518 = vadd.f32 %v320, %v517
        %v519 = vpop.f32.mrb[0].mxu0
        %v520 = vpop.f32.mrb[0].mxu0
        %v521 = vadd.f32 %v320, %v520
        %v522 = vpop.f32.mrb[0].mxu0
        %523 = vmatprep.mubr.bf16.mxu0 0
        %524 = vmatmul.mubr.bf16.gmra.mrb[0].mxu0 %v434
        %v525 = vpop.f32.mrb[0].mxu0
        %v526 = vadd.f32 %v320, %v525
        %v527 = vpop.f32.mrb[0].mxu0
        %v528 = vpop.f32.mrb[0].mxu0
        %v529 = vadd.f32 %v320, %v528
        %v530 = vpop.f32.mrb[0].mxu0
        %531 = vmatprep.mubr.bf16.mxu0 0
        %532 = vmatmul.mubr.bf16.gmra.mrb[0].mxu0 %v437
        %v533 = vpop.f32.mrb[0].mxu0
        %v534 = vadd.f32 %v320, %v533
        %v535 = vpop.f32.mrb[0].mxu0
        %v536 = vpop.f32.mrb[0].mxu0
        %v537 = vadd.f32 %v320, %v536
        %v538 = vpop.f32.mrb[0].mxu0
        %539 = vmatprep.mubr.bf16.mxu0 0
        %540 = vmatmul.mubr.bf16.gmra.mrb[0].mxu0 %v440
        %v541 = vpop.f32.mrb[0].mxu0
        %v542 = vadd.f32 %v320, %v541
        %v543 = vpop.f32.mrb[0].mxu0
        %v544 = vpop.f32.mrb[0].mxu0
        %v545 = vadd.f32 %v320, %v544
        %v546 = vpop.f32.mrb[0].mxu0
        %547 = vmatprep.mubr.bf16.mxu0 0
        %548 = vmatmul.mubr.bf16.gmra.mrb[0].mxu0 %v443
        %v549 = vpop.f32.mrb[0].mxu0
        %v550 = vadd.f32 %v320, %v549
        %v551 = vpop.f32.mrb[0].mxu0
        %v552 = vpop.f32.mrb[0].mxu0
        %v553 = vadd.f32 %v320, %v552
        %v554 = vpop.f32.mrb[0].mxu0
        %555 = vmatprep.mubr.bf16.mxu0 0
        %556 = vmatmul.mubr.bf16.gmra.mrb[0].mxu0 %v446
        %v557 = vpop.f32.mrb[0].mxu0
        %v558 = vadd.f32 %v320, %v557
        %v559 = vpop.f32.mrb[0].mxu0
        %v560 = vpop.f32.mrb[0].mxu0
        %v561 = vadd.f32 %v320, %v560
        %v562 = vpop.f32.mrb[0].mxu0
        %563 = vmatprep.mubr.bf16.mxu0 0
        %564 = vmatmul.mubr.bf16.gmra.mrb[0].mxu0 %v449
        %v565 = vpop.f32.mrb[0].mxu0
        %v566 = vadd.f32 %v320, %v565
        %v567 = vpop.f32.mrb[0].mxu0
        %v568 = vpop.f32.mrb[0].mxu0
        %v569 = vadd.f32 %v320, %v568
        %v570 = vpop.f32.mrb[0].mxu0
        %571 = vmatprep.mubr.bf16.mxu0 0
        %572 = vmatmul.mubr.bf16.gmra.mrb[0].mxu0 %v452
        %v573 = vpop.f32.mrb[0].mxu0
        %v574 = vadd.f32 %v320, %v573
        %v575 = vpop.f32.mrb[0].mxu0
        %v576 = vpop.f32.mrb[0].mxu0
        %v577 = vadd.f32 %v320, %v576
        %v578 = vpop.f32.mrb[0].mxu0
        %579 = vmatprep.mubr.bf16.mxu0 0
        %580 = vmatmul.mubr.bf16.gmra.mrb[0].mxu0 %v455
        %v581 = vpop.f32.mrb[0].mxu0
        %v582 = vadd.f32 %v320, %v581
        %v583 = vpop.f32.mrb[0].mxu0
        %v584 = vpop.f32.mrb[0].mxu0
        %v585 = vadd.f32 %v320, %v584
        %v586 = vpop.f32.mrb[0].mxu0
        %587 = vmatprep.mubr.bf16.mxu0 0
        %588 = vmatmul.mubr.bf16.gmra.mrb[0].mxu0 %v458
        %v589 = vpop.f32.mrb[0].mxu0
        %v590 = vadd.f32 %v320, %v589
        %v591 = vpop.f32.mrb[0].mxu0
        %v592 = vpop.f32.mrb[0].mxu0
        %v593 = vadd.f32 %v320, %v592
        %v594 = vpop.f32.mrb[0].mxu0
        %595 = vmatprep.mubr.bf16.mxu0 0
        %596 = vmatmul.mubr.bf16.gmra.mrb[0].mxu0 %v461
        %v597 = vpop.f32.mrb[0].mxu0
        %v598 = vadd.f32 %v320, %v597
        %v599 = vpop.f32.mrb[0].mxu0
        %v600 = vpop.f32.mrb[0].mxu0
        %v601 = vadd.f32 %v320, %v600
        %v602 = vpop.f32.mrb[0].mxu0
        %603 = vmatprep.mubr.bf16.mxu0 0
        %604 = vmatmul.mubr.bf16.gmra.mrb[0].mxu0 %v464
        %v605 = vpop.f32.mrb[0].mxu0
        %v606 = vadd.f32 %v320, %v605
        %v607 = vpop.f32.mrb[0].mxu0
        %v608 = vpop.f32.mrb[0].mxu0
        %v609 = vadd.f32 %v320, %v608
        %v610 = vpop.f32.mrb[0].mxu0
        %611 = vmatprep.mubr.bf16.mxu0 0
        %612 = vmatmul.mubr.bf16.gmra.mrb[0].mxu0 %v467
        %v613 = vpop.f32.mrb[0].mxu0
        %v614 = vadd.f32 %v320, %v613
        %v615 = vpop.f32.mrb[0].mxu0
        %v616 = vpop.f32.mrb[0].mxu0
        %v617 = vadd.f32 %v320, %v616
        %v618 = vpop.f32.mrb[0].mxu0
        %619 = vmatprep.mubr.bf16.mxu0 0
        %620 = vmatmul.mubr.bf16.gmra.mrb[0].mxu0 %v470
        %v621 = vpop.f32.mrb[0].mxu0
        %v622 = vadd.f32 %v320, %v621
        %v623 = vpop.f32.mrb[0].mxu0
        %v624 = vpop.f32.mrb[0].mxu0
        %v625 = vadd.f32 %v320, %v624
        %v626 = vpop.f32.mrb[0].mxu0
        %627 = vmatprep.mubr.bf16.mxu0 0
        %628 = vmatmul.mubr.bf16.gmra.mrb[0].mxu0 %v473
        %v629 = vpop.f32.mrb[0].mxu0
        %v630 = vadd.f32 %v320, %v629
        %v631 = vpop.f32.mrb[0].mxu0
        %v632 = vpop.f32.mrb[0].mxu0
        %v633 = vadd.f32 %v320, %v632
        %v634 = vpop.f32.mrb[0].mxu0
        %635 = vdwg.mxu0
        %636 = vst [vmem:[%s250] sm:$0xff] %v510
        %637 = vst [vmem:[%s250 + $0x8] sm:$0xff] %v513
        %638 = vst [vmem:[%s250 + $0x10] sm:$0xff] %v518
        %639 = vst [vmem:[%s250 + $0x18] sm:$0xff] %v521
        %640 = vst [vmem:[%s250 + $0x20] sm:$0xff] %v526
        %641 = vst [vmem:[%s250 + $0x28] sm:$0xff] %v529
        %642 = vst [vmem:[%s250 + $0x30] sm:$0xff] %v534
        %643 = vst [vmem:[%s250 + $0x38] sm:$0xff] %v537
        %644 = vst [vmem:[%s250 + $0x40] sm:$0xff] %v542
        %645 = vst [vmem:[%s250 + $0x48] sm:$0xff] %v545
        %646 = vst [vmem:[%s250 + $0x50] sm:$0xff] %v550
        %647 = vst [vmem:[%s250 + $0x58] sm:$0xff] %v553
        %648 = vst [vmem:[%s250 + $0x60] sm:$0xff] %v558
        %649 = vst [vmem:[%s250 + $0x68] sm:$0xff] %v561
        %650 = vst [vmem:[%s250 + $0x70] sm:$0xff] %v566
        %651 = vst [vmem:[%s250 + $0x78] sm:$0xff] %v569
        %652 = vst [vmem:[%s250 + $0x80] sm:$0xff] %v574
        %653 = vst [vmem:[%s250 + $0x88] sm:$0xff] %v577
        %654 = vst [vmem:[%s250 + $0x90] sm:$0xff] %v582
        %655 = vst [vmem:[%s250 + $0x98] sm:$0xff] %v585
        %656 = vst [vmem:[%s250 + $0xa0] sm:$0xff] %v590
        %657 = vst [vmem:[%s250 + $0xa8] sm:$0xff] %v593
        %658 = vst [vmem:[%s250 + $0xb0] sm:$0xff] %v598
        %659 = vst [vmem:[%s250 + $0xb8] sm:$0xff] %v601
        %660 = vst [vmem:[%s250 + $0xc0] sm:$0xff] %v606
        %661 = vst [vmem:[%s250 + $0xc8] sm:$0xff] %v609
        %662 = vst [vmem:[%s250 + $0xd0] sm:$0xff] %v614
        %663 = vst [vmem:[%s250 + $0xd8] sm:$0xff] %v617
        %664 = vst [vmem:[%s250 + $0xe0] sm:$0xff] %v622
        %665 = vst [vmem:[%s250 + $0xe8] sm:$0xff] %v625
        %666 = vst [vmem:[%s250 + $0xf0] sm:$0xff] %v630
        %667 = vst [vmem:[%s250 + $0xf8] sm:$0xff] %v633
        %v668 = vadd.f32 %v510, %v513
        %v669 = vadd.f32 %v668, %v518
        %v670 = vadd.f32 %v669, %v521
        %v671 = vadd.f32 %v670, %v526
        %v672 = vadd.f32 %v671, %v529
        %v673 = vadd.f32 %v672, %v534
        %v674 = vadd.f32 %v673, %v537
        %v675 = vadd.f32 %v674, %v542
        %v676 = vadd.f32 %v675, %v545
        %v677 = vadd.f32 %v676, %v550
        %v678 = vadd.f32 %v677, %v553
        %v679 = vadd.f32 %v678, %v558
        %v680 = vadd.f32 %v679, %v561
        %v681 = vadd.f32 %v680, %v566
        %v682 = vadd.f32 %v681, %v569
        %v683 = vadd.f32 %v682, %v574
        %v684 = vadd.f32 %v683, %v577
        %v685 = vadd.f32 %v684, %v582
        %v686 = vadd.f32 %v685, %v585
        %v687 = vadd.f32 %v686, %v590
        %v688 = vadd.f32 %v687, %v593
        %v689 = vadd.f32 %v688, %v598
        %v690 = vadd.f32 %v689, %v601
        %v691 = vadd.f32 %v690, %v606
        %v692 = vadd.f32 %v691, %v609
        %v693 = vadd.f32 %v692, %v614
        %v694 = vadd.f32 %v693, %v617
        %v695 = vadd.f32 %v694, %v622
        %v696 = vadd.f32 %v695, %v625
        %v697 = vadd.f32 %v696, %v630
        %v698 = vadd.f32 %v697, %v633
        %v699 = vrot.slane %v698, 4
        %v700 = vadd.f32 %v698, %v699
        %v701 = vrot.slane %v700, 2
        %v702 = vadd.f32 %v700, %v701
        %v703 = vrot.slane %v702, 1
        %v704 = vadd.f32 %v702, %v703
        %705 = vst [vmem:[%s256] sm:$0x1] %v704
        %v706 = vmul.f32 %v510, %v510
        %v707 = vmul.f32 %v513, %v513
        %v708 = vmul.f32 %v518, %v518
        %v709 = vmul.f32 %v521, %v521
        %v710 = vmul.f32 %v526, %v526
        %v711 = vmul.f32 %v529, %v529
        %v712 = vmul.f32 %v534, %v534
        %v713 = vmul.f32 %v537, %v537
        %v714 = vmul.f32 %v542, %v542
        %v715 = vmul.f32 %v545, %v545
        %v716 = vmul.f32 %v550, %v550
        %v717 = vmul.f32 %v553, %v553
        %v718 = vmul.f32 %v558, %v558
        %v719 = vmul.f32 %v561, %v561
        %v720 = vmul.f32 %v566, %v566
        %v721 = vmul.f32 %v569, %v569
        %v722 = vmul.f32 %v574, %v574
        %v723 = vmul.f32 %v577, %v577
        %v724 = vmul.f32 %v582, %v582
        %v725 = vmul.f32 %v585, %v585
        %v726 = vmul.f32 %v590, %v590
        %v727 = vmul.f32 %v593, %v593
        %v728 = vmul.f32 %v598, %v598
        %v729 = vmul.f32 %v601, %v601
        %v730 = vmul.f32 %v606, %v606
        %v731 = vmul.f32 %v609, %v609
        %v732 = vmul.f32 %v614, %v614
        %v733 = vmul.f32 %v617, %v617
        %v734 = vmul.f32 %v622, %v622
        %v735 = vmul.f32 %v625, %v625
        %v736 = vmul.f32 %v630, %v630
        %v737 = vmul.f32 %v633, %v633
        %v738 = vadd.f32 %v706, %v707
        %v739 = vadd.f32 %v738, %v708
        %v740 = vadd.f32 %v739, %v709
        %v741 = vadd.f32 %v740, %v710
        %v742 = vadd.f32 %v741, %v711
        %v743 = vadd.f32 %v742, %v712
        %v744 = vadd.f32 %v743, %v713
        %v745 = vadd.f32 %v744, %v714
        %v746 = vadd.f32 %v745, %v715
        %v747 = vadd.f32 %v746, %v716
        %v748 = vadd.f32 %v747, %v717
        %v749 = vadd.f32 %v748, %v718
        %v750 = vadd.f32 %v749, %v719
        %v751 = vadd.f32 %v750, %v720
        %v752 = vadd.f32 %v751, %v721
        %v753 = vadd.f32 %v752, %v722
        %v754 = vadd.f32 %v753, %v723
        %v755 = vadd.f32 %v754, %v724
        %v756 = vadd.f32 %v755, %v725
        %v757 = vadd.f32 %v756, %v726
        %v758 = vadd.f32 %v757, %v727
        %v759 = vadd.f32 %v758, %v728
        %v760 = vadd.f32 %v759, %v729
        %v761 = vadd.f32 %v760, %v730
        %v762 = vadd.f32 %v761, %v731
        %v763 = vadd.f32 %v762, %v732
        %v764 = vadd.f32 %v763, %v733
        %v765 = vadd.f32 %v764, %v734
        %v766 = vadd.f32 %v765, %v735
        %v767 = vadd.f32 %v766, %v736
        %v768 = vadd.f32 %v767, %v737
        %v769 = vrot.slane %v768, 4
        %v770 = vadd.f32 %v768, %v769
        %v771 = vrot.slane %v770, 2
        %v772 = vadd.f32 %v770, %v771
        %v773 = vrot.slane %v772, 1
        %v774 = vadd.f32 %v772, %v773
        %775 = vst [vmem:[%s262] sm:$0x1] %v774
        %s776 = sand.u32 %s115, 1
        %s777 = scalar_lea.sflag [#allocation3], %s776
        %s778 = sand.u32 %s115, 1
        %s779 = smul.addr %s778, 256
        %s780 = scalar_lea.vmem [#allocation2], %s779
        %s781 = sand.u32 %s23, 1
        %s782 = scalar_lea.sflag [#allocation5], %s781
        %s783 = sand.u32 %s143, 1
        %s784 = scalar_lea.vmem [#allocation4], %s783
        %s785 = sand.u32 %s23, 1
        %s786 = scalar_lea.sflag [#allocation5], %s785
        %s787 = sand.u32 %s171, 1
        %s788 = scalar_lea.vmem [#allocation6], %s787
        // Predicated region
        $region33: #{tpu_custom_call.1} parent=31 // pred_check
          %p789 = pneg %p125
        $region34: #{tpu_custom_call.1} parent=31 // pred_check_branch
          %791 = sbr.rel (%p789) target = $region36
        $region35: #{tpu_custom_call.1} parent=31 // pred_region
          %s792 = smul.u32 32, %s28
          %s794 = ssub.s32 4096, 4096
          %795 = vsyncadd %s777, %s794
          %s796 = smul.addr %s27, 32
          %s797 = sadd.s32 %s792, %s796
          %s798 = smul.addr %s797, 128
          %s799 = scalar_lea.hbm %s3, %s798
          %s800 = sshll.u32 %s780, 4
          %s801 = int_to_ptr.vmem [resolvable:$true] %s800
          %806 = dma.vmem_to_hbm [thread:$0]  %s801, 4096, %s799, %s777, 128, 128, 8
        $region36: #{tpu_custom_call.1} parent=31 // pred_fallthru
          _
        // Predicated region
        $region37: #{tpu_custom_call.1} parent=31 // pred_check
          %p807 = pneg %p153
        $region38: #{tpu_custom_call.1} parent=31 // pred_check_branch
          %809 = sbr.rel (%p807) target = $region40
        $region39: #{tpu_custom_call.1} parent=31 // pred_region
          %s811 = ssub.s32 16, 16
          %812 = vsyncadd %s782, %s811
          %s813 = sadd.s32 %s28, %s27
          %s814 = smul.addr %s813, 16
          %s815 = scalar_lea.hbm %s4, %s814
          %s817 = sshll.u32 %s784, 4
          %s818 = int_to_ptr.vmem [resolvable:$true] %s817
          %820 = dma.vmem_to_hbm [thread:$0]  %s818, 16, %s815, %s782
        $region40: #{tpu_custom_call.1} parent=31 // pred_fallthru
          _
        // Predicated region
        $region41: #{tpu_custom_call.1} parent=31 // pred_check
          %p821 = pneg %p181
        $region42: #{tpu_custom_call.1} parent=31 // pred_check_branch
          %823 = sbr.rel (%p821) target = $region44
        $region43: #{tpu_custom_call.1} parent=31 // pred_region
          %s825 = ssub.s32 16, 16
          %826 = vsyncadd %s786, %s825
          %s827 = sadd.s32 %s28, %s27
          %s828 = smul.addr %s827, 16
          %s829 = scalar_lea.hbm %s5, %s828
          %s831 = sshll.u32 %s788, 4
          %s832 = int_to_ptr.vmem [resolvable:$true] %s831
          %834 = dma.vmem_to_hbm [thread:$0]  %s832, 16, %s829, %s786
        $region44: #{tpu_custom_call.1} parent=31 // pred_fallthru
          _
      $region32: #{tpu_custom_call.1} parent=5 // pred_fallthru
        _
      %p835 = scmp.le.s32.totalorder 2, %s18
      // Predicated region
      $region45: #{tpu_custom_call.1} parent=5 // pred_check
        %p836 = pneg %p835
      $region46: #{tpu_custom_call.1} parent=5 // pred_check_branch
        %838 = sbr.rel (%p836) target = $region48
      $region47: #{tpu_custom_call.1} parent=5 // pred_region
        %s839 = ssub.s32 %s18, 2
        // Predicated region
        $region49: #{tpu_custom_call.1} parent=47 // pred_check
          %p840 = pneg %p131
        $region50: #{tpu_custom_call.1} parent=47 // pred_check_branch
          %842 = sbr.rel (%p840) target = $region52
        $region51: #{tpu_custom_call.1} parent=47 // pred_region
          %s843 = sand.u32 %s116, 1
          %s844 = scalar_lea.sflag [#allocation3], %s843
          %s845 = sand.u32 %s116, 1
          %s846 = smul.addr %s845, 256
          %s847 = scalar_lea.vmem [#allocation2], %s846
          %848 = dma.done %s844, 4096
        $region52: #{tpu_custom_call.1} parent=47 // pred_fallthru
          _
        // Predicated region
        $region53: #{tpu_custom_call.1} parent=47 // pred_check
          %p849 = pneg %p159
        $region54: #{tpu_custom_call.1} parent=47 // pred_check_branch
          %851 = sbr.rel (%p849) target = $region56
        $region55: #{tpu_custom_call.1} parent=47 // pred_region
          %s852 = sand.u32 %s24, 1
          %s853 = scalar_lea.sflag [#allocation5], %s852
          %s854 = sand.u32 %s144, 1
          %s855 = scalar_lea.vmem [#allocation4], %s854
          %856 = dma.done %s853, 16
        $region56: #{tpu_custom_call.1} parent=47 // pred_fallthru
          _
        // Predicated region
        $region57: #{tpu_custom_call.1} parent=47 // pred_check
          %p857 = pneg %p187
        $region58: #{tpu_custom_call.1} parent=47 // pred_check_branch
          %859 = sbr.rel (%p857) target = $region60
        $region59: #{tpu_custom_call.1} parent=47 // pred_region
          %s860 = sand.u32 %s24, 1
          %s861 = scalar_lea.sflag [#allocation5], %s860
          %s862 = sand.u32 %s172, 1
          %s863 = scalar_lea.vmem [#allocation6], %s862
          %864 = dma.done %s861, 16
        $region60: #{tpu_custom_call.1} parent=47 // pred_fallthru
          _
      $region48: #{tpu_custom_call.1} parent=5 // pred_fallthru
        _
    $region6: #{tpu_custom_call.1} parent=1 // loop_footer
      %s22 = sadd.s32 1, %s18
    $region7: #{tpu_custom_call.1} parent=1 // loop_footer_branch
      %17 = sbr.rel target = $region3
    $region8: #{tpu_custom_call.1} parent=1 // loop_exit
      _
    %865 = vsyncpa [#allocation3], 1
    %s866 = scalar_lea.sflag [#allocation3], 1
    %867 = vsyncpa %s866, 1
    %868 = vsyncpa [#allocation5], 1
    %s869 = scalar_lea.sflag [#allocation5], 1
    %870 = vsyncpa %s869, 1

</llo_original>
